<compile_context>
chip_gen: v5e
topology: v5e:2x2
jax: 0.10.0
libtpu: 0.0.40
codegen_flags: <defaults>
</compile_context>

<pallas_src>
import functools

import jax
import jax.numpy as jnp
from jax import lax
from jax.experimental import pallas as pl
from jax.experimental.pallas import tpu as pltpu


def _round_up(a, b):
    return ((a + b - 1) // b) * b


def _soft_margin_kernel(x_ref, p_ref, tm_ref, out_ref, *, beta):
    x = x_ref[...].astype(jnp.float32)            # (TN, D)  native dtype -> f32
    p = p_ref[...]                                # (D,  C)  f32, pre-transposed
    sim = jnp.dot(x, p, preferred_element_type=jnp.float32)   # (TN, C) -- MXU

    tgt = tm_ref[...]                             # (TN, 1) int32; -1 => masked out
    tn, c = sim.shape
    cls = lax.broadcasted_iota(jnp.int32, (tn, c), 1)
    onehot = cls == tgt                           # (TN, C) bool (all-false if masked)

    # positive similarity (target class) per row
    pos = jnp.sum(jnp.where(onehot, sim, 0.0), axis=1, keepdims=True)   # (TN, 1)
    diff = sim - pos                                                    # (TN, C)

    # F.softplus(diff, beta) with PyTorch's default threshold=20:
    #   beta*diff > 20  -> diff  (linear region)
    #   otherwise       -> (1/beta) * log1p(exp(beta*diff))
    z = beta * diff
    sp = jnp.where(z > 20.0, diff,
                   (1.0 / beta) * jnp.log1p(jnp.exp(jnp.minimum(z, 20.0))))
    # exclude the target class (torch builds neg_sim excluding it)
    sp = jnp.where(onehot, 0.0, sp)

    row_loss = jnp.sum(sp, axis=1, keepdims=True)   # (TN, 1)
    valid = tgt >= 0
    row_loss = jnp.where(valid, row_loss, 0.0)
    nz = jnp.where(valid & (row_loss > 0.0), 1.0, 0.0)

    block_sum = jnp.sum(row_loss)                   # scalar partial for this block
    block_cnt = jnp.sum(nz)

    # Write partials into lanes 0/1 of an (8,128)-aligned output slab.
    sub = lax.broadcasted_iota(jnp.int32, (8, 128), 0)
    lane = lax.broadcasted_iota(jnp.int32, (8, 128), 1)
    slab = jnp.where((sub == 0) & (lane == 0), block_sum,
                     jnp.where((sub == 0) & (lane == 1), block_cnt, 0.0))
    out_ref[0] = slab


def soft_margin_loss(x, targets, masks, centroids, *, beta=20.0, tn=512):
    """x: (N, D), targets: (N,) int, masks: (N,) bool, centroids: (C, D)."""
    N, D = x.shape
    C = centroids.shape[0]

    # getNormalizedCentrioids(): mean-center along embed dim, L2 normalize,
    # and pre-transpose once so the kernel does (TN,D) x (D,C) directly.
    cf = centroids.astype(jnp.float32)
    pm = cf - jnp.mean(cf, axis=-1, keepdims=True)
    pn = pm / jnp.maximum(jnp.linalg.norm(pm, axis=-1, keepdims=True), 1e-12)
    pT = jnp.transpose(pn)                               # (D, C) f32

    # Pack (target, mask) into one int32 stream: target if masked-in else -1.
    tgt_flat = targets.reshape(-1).astype(jnp.int32)
    msk_flat = masks.reshape(-1).astype(bool)
    tm = jnp.where(msk_flat, tgt_flat, jnp.int32(-1)).reshape(N, 1)

    # --- tile-size selection --------------------------------------------------
    x_bytes = jnp.dtype(x.dtype).itemsize

    def tile_bytes(t):
        # double-buffered x + packed targets, resident centroids, output slabs
        return (2 * t * D * x_bytes + 2 * t * 4
                + 2 * D * C * 4 + 2 * 8 * 128 * 4)

    budget = 40 << 20                      # stays well under v7x's 64 MiB VMEM
    tn = max(8, _round_up(min(tn, _round_up(N, 8)), 8))
    while tn > 8 and tile_bytes(tn) > budget:
        tn = max(8, _round_up(tn // 2, 8))

    Np = _round_up(N, tn)
    if Np != N:
        x = jnp.pad(x, ((0, Np - N), (0, 0)))
        tm = jnp.pad(tm, ((0, Np - N), (0, 0)), constant_values=-1)
    num_blocks = Np // tn

    vmem_limit = int(min(max(2 * tile_bytes(tn), 8 << 20), 48 << 20))

    # --- kernel call ----------------------------------------------------------
    partials = pl.pallas_call(
        functools.partial(_soft_margin_kernel, beta=float(beta)),
        out_shape=jax.ShapeDtypeStruct((num_blocks, 8, 128), jnp.float32),
        grid_spec=pltpu.PrefetchScalarGridSpec(
            num_scalar_prefetch=0,
            grid=(num_blocks,),
            in_specs=[
                pl.BlockSpec((tn, D), lambda i: (i, 0)),   # x tile (native dtype)
                pl.BlockSpec((D, C), lambda i: (0, 0)),    # pre-transposed centroids
                pl.BlockSpec((tn, 1), lambda i: (i, 0)),   # packed target/mask tile
            ],
            out_specs=pl.BlockSpec((1, 8, 128), lambda i: (i, 0, 0)),
        ),
        compiler_params=pltpu.CompilerParams(
            dimension_semantics=("parallel",),
            vmem_limit_bytes=vmem_limit),
    )(x, pT, tm)

    total = jnp.sum(partials[:, 0, 0])
    cnt = jnp.sum(partials[:, 0, 1])
    # NOTE: matches original module semantics — if no row has positive loss the
    # division yields inf/nan, exactly as torch.sum(...)/nonzero_cnt would.
    return total / cnt


def _reference(x, targets, masks, centroids, beta=20.0):
    pm = centroids - jnp.mean(centroids, axis=-1, keepdims=True)
    pn = pm / jnp.maximum(jnp.linalg.norm(pm, axis=-1, keepdims=True), 1e-12)
    sim = x.astype(jnp.float32) @ pn.T
    pos = jnp.take_along_axis(sim, targets[:, None], axis=1)
    diff = sim - pos
    z = beta * diff
    sp = jnp.where(z > 20.0, diff,
                   (1.0 / beta) * jnp.log1p(jnp.exp(jnp.minimum(z, 20.0))))
    onehot = jax.nn.one_hot(targets, centroids.shape[0], dtype=jnp.bool_)
    sp = jnp.where(onehot, 0.0, sp)
    row = jnp.sum(sp, axis=1)
    row = jnp.where(masks, row, 0.0)
    cnt = jnp.sum(jnp.where(masks & (row > 0.0), 1.0, 0.0))
    return jnp.sum(row) / cnt


if __name__ == "__main__":
    num_classes, embed_dim, N = 4, 32, 20
    key = jax.random.PRNGKey(0)
    k_c, k_x, k_t = jax.random.split(key, 3)

    # Deterministic parameter init mimicking:
    #   normal_(0,1).renorm_(2, 1, 1e-5).mul_(1e5)  ->  unit-norm columns.
    centroids = jax.random.normal(k_c, (num_classes, embed_dim), dtype=jnp.float32)
    centroids = centroids / jnp.maximum(
        jnp.linalg.norm(centroids, axis=0, keepdims=True), 1e-12)

    x = jax.random.normal(k_x, (N, embed_dim), dtype=jnp.float32)
    targets = jax.random.randint(k_t, (N,), 0, num_classes, dtype=jnp.int32)
    masks = (jnp.arange(N) % 3) != 0          # deterministic boolean mask

    # tn=8 at this tiny N exercises the multi-block partial-reduction path
    # (and the N % tn padding); production sizes use the default tn=512.
    loss = soft_margin_loss(x, targets, masks, centroids, beta=20.0, tn=8)
    loss = jax.block_until_ready(loss)

    ref = _reference(x, targets, masks, centroids, beta=20.0)
    assert jnp.allclose(loss, ref, rtol=1e-5, atol=1e-6), (loss, ref)

    print("KERNEL_OK")
</pallas_src>

<mosaic_0001>
module attributes {stable_mosaic.version = 11 : i64} {
  func.func @_soft_margin_kernel(%arg0: i32, %arg1: memref<8x32xf32, #tpu.memory_space<vmem>>, %arg2: memref<32x4xf32, #tpu.memory_space<vmem>>, %arg3: memref<8x1xi32, #tpu.memory_space<vmem>>, %arg4: memref<1x8x128xf32, #tpu.memory_space<vmem>>) attributes {dimension_semantics = [#tpu.dimension_semantics<parallel>], iteration_bounds = array<i64: 3>, scalar_prefetch = 0 : i64, scratch_operands = 0 : i64, tpu.core_type = #tpu.core_type<tc>, window_params = [{transform_indices = @transform_0, window_bounds = array<i64: 8, 32>}, {pipeline_mode = #tpu.pipeline_mode<synchronous>, transform_indices = @transform_1, window_bounds = array<i64: 32, 4>}, {transform_indices = @transform_2, window_bounds = array<i64: 8, 1>}, {transform_indices = @transform_3, window_bounds = array<i64: 1, 8, 128>}]} {
    %c0 = arith.constant 0 : index
    %c0_0 = arith.constant 0 : index
    %0 = vector.load %arg1[%c0, %c0_0] : memref<8x32xf32, #tpu.memory_space<vmem>>, vector<8x32xf32>
    %c0_1 = arith.constant 0 : index
    %c0_2 = arith.constant 0 : index
    %1 = vector.load %arg2[%c0_1, %c0_2] : memref<32x4xf32, #tpu.memory_space<vmem>>, vector<32x4xf32>
    %cst = arith.constant dense<0.000000e+00> : vector<8x4xf32>
    %2 = tpu.matmul %0, %1, %cst {dimension_numbers = #tpu.dot_dimension_numbers<[1], [0], [0], [1], [0, 0, 1, 1], [], []>} : vector<8x32xf32>, vector<32x4xf32>, vector<8x4xf32> -> vector<8x4xf32>
    %c0_3 = arith.constant 0 : index
    %c0_4 = arith.constant 0 : index
    %3 = vector.load %arg3[%c0_3, %c0_4] : memref<8x1xi32, #tpu.memory_space<vmem>>, vector<8x1xi32>
    %4 = tpu.iota {dimensions = array<i32: 1>} : vector<8x4xi32>
    %5 = vector.broadcast %3 : vector<8x1xi32> to vector<8x4xi32>
    %6 = arith.cmpi eq, %4, %5 : vector<8x4xi32>
    %cst_5 = arith.constant 0.000000e+00 : f32
    %7 = vector.broadcast %cst_5 : f32 to vector<8x4xf32>
    %8 = arith.select %6, %2, %7 : vector<8x4xi1>, vector<8x4xf32>
    %cst_6 = arith.constant dense<0.000000e+00> : vector<8xf32>
    %9 = vector.multi_reduction <add>, %8, %cst_6 [1] : vector<8x4xf32> to vector<8xf32>
    %10 = vector.shape_cast %9 : vector<8xf32> to vector<8x1xf32>
    %11 = vector.broadcast %10 : vector<8x1xf32> to vector<8x4xf32>
    %12 = arith.subf %2, %11 : vector<8x4xf32>
    %cst_7 = arith.constant 2.000000e+01 : f32
    %13 = vector.broadcast %cst_7 : f32 to vector<8x4xf32>
    %14 = arith.mulf %13, %12 : vector<8x4xf32>
    %cst_8 = arith.constant 2.000000e+01 : f32
    %15 = vector.broadcast %cst_8 : f32 to vector<8x4xf32>
    %16 = arith.cmpf ogt, %14, %15 : vector<8x4xf32>
    %cst_9 = arith.constant 2.000000e+01 : f32
    %17 = vector.broadcast %cst_9 : f32 to vector<8x4xf32>
    %18 = arith.minimumf %14, %17 : vector<8x4xf32>
    %19 = math.exp %18 : vector<8x4xf32>
    %20 = math.log1p %19 : vector<8x4xf32>
    %cst_10 = arith.constant 5.000000e-02 : f32
    %21 = vector.broadcast %cst_10 : f32 to vector<8x4xf32>
    %22 = arith.mulf %21, %20 : vector<8x4xf32>
    %23 = arith.select %16, %12, %22 : vector<8x4xi1>, vector<8x4xf32>
    %cst_11 = arith.constant 0.000000e+00 : f32
    %24 = vector.broadcast %cst_11 : f32 to vector<8x4xf32>
    %25 = arith.select %6, %24, %23 : vector<8x4xi1>, vector<8x4xf32>
    %cst_12 = arith.constant dense<0.000000e+00> : vector<8xf32>
    %26 = vector.multi_reduction <add>, %25, %cst_12 [1] : vector<8x4xf32> to vector<8xf32>
    %27 = vector.shape_cast %26 : vector<8xf32> to vector<8x1xf32>
    %c0_i32 = arith.constant 0 : i32
    %28 = vector.broadcast %c0_i32 : i32 to vector<8x1xi32>
    %29 = arith.cmpi sge, %3, %28 : vector<8x1xi32>
    %cst_13 = arith.constant 0.000000e+00 : f32
    %30 = vector.broadcast %cst_13 : f32 to vector<8x1xf32>
    %31 = arith.select %29, %27, %30 : vector<8x1xi1>, vector<8x1xf32>
    %cst_14 = arith.constant 0.000000e+00 : f32
    %32 = vector.broadcast %cst_14 : f32 to vector<8x1xf32>
    %33 = arith.cmpf ogt, %31, %32 : vector<8x1xf32>
    %34 = arith.andi %29, %33 : vector<8x1xi1>
    %cst_15 = arith.constant 1.000000e+00 : f32
    %cst_16 = arith.constant 0.000000e+00 : f32
    %35 = vector.broadcast %cst_15 : f32 to vector<8x1xf32>
    %36 = vector.broadcast %cst_16 : f32 to vector<8x1xf32>
    %37 = arith.select %34, %35, %36 : vector<8x1xi1>, vector<8x1xf32>
    %38 = vector.shape_cast %31 : vector<8x1xf32> to vector<1x8x1xf32>
    %cst_17 = arith.constant dense<0.000000e+00> : vector<1xf32>
    %39 = vector.multi_reduction <add>, %38, %cst_17 [1, 2] : vector<1x8x1xf32> to vector<1xf32>
    %40 = vector.shape_cast %39 : vector<1xf32> to vector<1x1x1xf32>
    %41 = vector.extract %40[0, 0, 0] : f32 from vector<1x1x1xf32>
    %42 = vector.shape_cast %37 : vector<8x1xf32> to vector<1x8x1xf32>
    %cst_18 = arith.constant dense<0.000000e+00> : vector<1xf32>
    %43 = vector.multi_reduction <add>, %42, %cst_18 [1, 2] : vector<1x8x1xf32> to vector<1xf32>
    %44 = vector.shape_cast %43 : vector<1xf32> to vector<1x1x1xf32>
    %45 = vector.extract %44[0, 0, 0] : f32 from vector<1x1x1xf32>
    %46 = tpu.iota {dimensions = array<i32: 0>} : vector<8x128xi32>
    %47 = tpu.iota {dimensions = array<i32: 1>} : vector<8x128xi32>
    %c0_i32_19 = arith.constant 0 : i32
    %48 = vector.broadcast %c0_i32_19 : i32 to vector<8x128xi32>
    %49 = arith.cmpi eq, %46, %48 : vector<8x128xi32>
    %c0_i32_20 = arith.constant 0 : i32
    %50 = vector.broadcast %c0_i32_20 : i32 to vector<8x128xi32>
    %51 = arith.cmpi eq, %47, %50 : vector<8x128xi32>
    %52 = arith.andi %49, %51 : vector<8x128xi1>
    %c0_i32_21 = arith.constant 0 : i32
    %53 = vector.broadcast %c0_i32_21 : i32 to vector<8x128xi32>
    %54 = arith.cmpi eq, %46, %53 : vector<8x128xi32>
    %c1_i32 = arith.constant 1 : i32
    %55 = vector.broadcast %c1_i32 : i32 to vector<8x128xi32>
    %56 = arith.cmpi eq, %47, %55 : vector<8x128xi32>
    %57 = arith.andi %54, %56 : vector<8x128xi1>
    %cst_22 = arith.constant 0.000000e+00 : f32
    %58 = vector.broadcast %45 : f32 to vector<8x128xf32>
    %59 = vector.broadcast %cst_22 : f32 to vector<8x128xf32>
    %60 = arith.select %57, %58, %59 : vector<8x128xi1>, vector<8x128xf32>
    %61 = vector.broadcast %41 : f32 to vector<8x128xf32>
    %62 = arith.select %52, %61, %60 : vector<8x128xi1>, vector<8x128xf32>
    %c0_23 = arith.constant 0 : index
    %c0_24 = arith.constant 0 : index
    %c0_25 = arith.constant 0 : index
    %63 = vector.load %arg4[%c0_23, %c0_24, %c0_25] : memref<1x8x128xf32, #tpu.memory_space<vmem>>, vector<1x8x128xf32>
    %64 = vector.shape_cast %63 : vector<1x8x128xf32> to vector<8x128xf32>
    %65 = vector.shape_cast %62 : vector<8x128xf32> to vector<1x8x128xf32>
    tpu.vector_store %arg4[%c0_23, %c0_24, %c0_25], %65 {strides = array<i32>} : memref<1x8x128xf32, #tpu.memory_space<vmem>>, vector<1x8x128xf32>,
    return
  }
  func.func @transform_0(%arg0: i32) -> (i32, i32) {
    %c0_i32 = arith.constant 0 : i32
    %c0_i32_0 = arith.constant 0 : i32
    return %arg0, %c0_i32 : i32, i32
  }
  func.func @transform_1(%arg0: i32) -> (i32, i32) {
    %c0_i32 = arith.constant 0 : i32
    %c0_i32_0 = arith.constant 0 : i32
    %c0_i32_1 = arith.constant 0 : i32
    return %c0_i32, %c0_i32_0 : i32, i32
  }
  func.func @transform_2(%arg0: i32) -> (i32, i32) {
    %c0_i32 = arith.constant 0 : i32
    %c0_i32_0 = arith.constant 0 : i32
    return %arg0, %c0_i32 : i32, i32
  }
  func.func @transform_3(%arg0: i32) -> (i32, i32, i32) {
    %c0_i32 = arith.constant 0 : i32
    %c0_i32_0 = arith.constant 0 : i32
    %c0_i32_1 = arith.constant 0 : i32
    return %arg0, %c0_i32, %c0_i32_0 : i32, i32, i32
  }
}

</mosaic_0001>

<llo_original>
// kernel: tpu_custom_call.1
$region0: #{tpu_custom_call.1}
  #allocation0 [shape = 'u32[]', space=smem, size = 0x4, offset = 0x4, fixed_abs, tag = 'smem constant byte address 0x4 - core index']
  #allocation1 [shape = 'u32[72,128]{1,0:T(1,128)}', space=vmem, size = 0x9000, scoped, tag = 'internal scratch']
  %s0 = inlined_call_operand.vmem [shape: f32[24,32], index: 0, kind: input, shape index: {}]
  %s1 = inlined_call_operand.vmem [shape: f32[32,4], index: 1, kind: input, shape index: {}]
  %s2 = inlined_call_operand.vmem [shape: s32[24,1], index: 2, kind: input, shape index: {}]
  %s3 = inlined_call_operand.hbm [shape: f32[3,8,128], index: 3, kind: output, shape index: {}]
  %s4 = sld [smem:[#allocation0]]
  $region45: #{tpu_custom_call.1} parent=0
    _
  %s6 = ssub.s32 1, %s4
  %s7 = scalar_select 0, %s6, %s4
  $region1: #{tpu_custom_call.1} parent=0
    #allocation2 [shape = 'u8[8192]{0}', space=vmem, size = 0x2000, scoped, tag = 'output window, operand 0']
    #allocation3 [shape = 's32[2]{0}', space=sflag, size = 0x8, scoped, tag = 'scoped memory for tpu_custom_call.1']
    %8 = vsyncpa [#allocation3], 0
    %s9 = scalar_lea.sflag [#allocation3], 1
    %10 = vsyncpa %s9, 0
    loop: start=0, step=1, limit=5
    $region2: #{tpu_custom_call.1} parent=1 // loop_pre_header
      _
    $region3: #{tpu_custom_call.1} parent=1 // loop_header
      %s12 = sphi 0, %s16
      %p13 = scmp.ge.s32.totalorder %s12, 5
      %s22 = sphi 0, %s24
      %s25 = sphi 0, %s22
      %s26 = sphi 0, %s25
      %s42 = sphi 0, %s26
      %s46 = sphi 0, %s46
      %s48 = sphi 0, %s46
      %s49 = sphi 0, %s48
      %s63 = sphi 0, %s49
      %s69 = sphi 0, %s71
      %s72 = sphi 0, %s69
      %s73 = sphi 0, %s72
      %s89 = sphi 0, %s73
      %s95 = sphi 0, %s97
      %s98 = sphi 0, %s95
      %s99 = sphi 0, %s98
      %s115 = sphi 0, %s99
    $region4: #{tpu_custom_call.1} parent=1 // loop_header_branch
      %15 = sbr.rel (%p13) target = $region8
    $region5: #{tpu_custom_call.1} parent=1 // loop_body
      %s17 = ssub.s32 %s12, 1
      %s18 = ssub.s32 %s12, 2
      %s19 = sadd.s32 %s12, 1
      %s20 = ssub.s32 %s12, %s19
      %p21 = scmp.eq.s32.totalorder %s20, 0
      %s23 = sadd.s32 %s22, 1
      %s24 = scalar_select %p21, %s22, %s23
      %p27 = pneg %p21
      %p28 = scmp.eq.s32.totalorder %s12, 2
      %p29 = por %p27, %p28
      %p30 = scmp.ne.s32.totalorder %s22, %s25
      %p31 = scmp.eq.s32.totalorder %s12, 0
      %p32 = por %p30, %p31
      %p33 = scmp.ne.s32.totalorder %s22, %s25
      %p34 = scmp.eq.s32.totalorder %s17, 2
      %p35 = por %p33, %p34
      %p36 = scmp.ne.s32.totalorder %s25, %s26
      %p37 = scmp.eq.s32.totalorder %s17, 0
      %p38 = por %p36, %p37
      %p39 = scmp.ne.s32.totalorder %s25, %s26
      %p40 = scmp.eq.s32.totalorder %s18, 2
      %p41 = por %p39, %p40
      %p43 = scmp.ne.s32.totalorder %s26, %s42
      %p44 = scmp.eq.s32.totalorder %s18, 0
      %p45 = por %p43, %p44
      %s47 = sadd.s32 %s46, 1
      %p50 = scmp.eq.s32.totalorder %s12, 2
      %p51 = scmp.ne.s32.totalorder %s46, %s48
      %p52 = scmp.eq.s32.totalorder %s12, 0
      %p53 = por %p51, %p52
      %p54 = scmp.ne.s32.totalorder %s46, %s48
      %p55 = scmp.eq.s32.totalorder %s17, 2
      %p56 = por %p54, %p55
      %p57 = scmp.ne.s32.totalorder %s48, %s49
      %p58 = scmp.eq.s32.totalorder %s17, 0
      %p59 = por %p57, %p58
      %p60 = scmp.ne.s32.totalorder %s48, %s49
      %p61 = scmp.eq.s32.totalorder %s18, 2
      %p62 = por %p60, %p61
      %p64 = scmp.ne.s32.totalorder %s49, %s63
      %p65 = scmp.eq.s32.totalorder %s18, 0
      %p66 = por %p64, %p65
      %s67 = ssub.s32 %s12, %s19
      %p68 = scmp.eq.s32.totalorder %s67, 0
      %s70 = sadd.s32 %s69, 1
      %s71 = scalar_select %p68, %s69, %s70
      %p74 = pneg %p68
      %p75 = scmp.eq.s32.totalorder %s12, 2
      %p76 = por %p74, %p75
      %p77 = scmp.ne.s32.totalorder %s69, %s72
      %p78 = scmp.eq.s32.totalorder %s12, 0
      %p79 = por %p77, %p78
      %p80 = scmp.ne.s32.totalorder %s69, %s72
      %p81 = scmp.eq.s32.totalorder %s17, 2
      %p82 = por %p80, %p81
      %p83 = scmp.ne.s32.totalorder %s72, %s73
      %p84 = scmp.eq.s32.totalorder %s17, 0
      %p85 = por %p83, %p84
      %p86 = scmp.ne.s32.totalorder %s72, %s73
      %p87 = scmp.eq.s32.totalorder %s18, 2
      %p88 = por %p86, %p87
      %p90 = scmp.ne.s32.totalorder %s73, %s89
      %p91 = scmp.eq.s32.totalorder %s18, 0
      %p92 = por %p90, %p91
      %s93 = ssub.s32 %s12, %s19
      %p94 = scmp.eq.s32.totalorder %s93, 0
      %s96 = sadd.s32 %s95, 1
      %s97 = scalar_select %p94, %s95, %s96
      %p100 = pneg %p94
      %p101 = scmp.eq.s32.totalorder %s12, 2
      %p102 = por %p100, %p101
      %p103 = scmp.ne.s32.totalorder %s95, %s98
      %p104 = scmp.eq.s32.totalorder %s12, 0
      %p105 = por %p103, %p104
      %p106 = scmp.ne.s32.totalorder %s95, %s98
      %p107 = scmp.eq.s32.totalorder %s17, 2
      %p108 = por %p106, %p107
      %p109 = scmp.ne.s32.totalorder %s98, %s99
      %p110 = scmp.eq.s32.totalorder %s17, 0
      %p111 = por %p109, %p110
      %p112 = scmp.ne.s32.totalorder %s98, %s99
      %p113 = scmp.eq.s32.totalorder %s18, 2
      %p114 = por %p112, %p113
      %p116 = scmp.ne.s32.totalorder %s99, %s115
      %p117 = scmp.eq.s32.totalorder %s18, 0
      %p118 = por %p116, %p117
      %p119 = scmp.le.s32.totalorder 1, %s12
      %p120 = scmp.lt.s32.totalorder %s12, 4
      %p121 = pnand %p119, %p120
      %p122 = pneg %p121
      // Predicated region
      $region9: #{tpu_custom_call.1} parent=5 // pred_check
        _
      $region10: #{tpu_custom_call.1} parent=5 // pred_check_branch
        %124 = sbr.rel (%p121) target = $region12
      $region11: #{tpu_custom_call.1} parent=5 // pred_region
        %s125 = ssub.s32 %s12, 1
        // Predicated region
        $region13: #{tpu_custom_call.1} parent=11 // pred_check
          %p126 = pneg %p59
        $region14: #{tpu_custom_call.1} parent=11 // pred_check_branch
          %128 = sbr.rel (%p126) target = $region16
        $region15: #{tpu_custom_call.1} parent=11 // pred_region
          _
        $region16: #{tpu_custom_call.1} parent=11 // pred_fallthru
          _
      $region12: #{tpu_custom_call.1} parent=5 // pred_fallthru
        _
      %p129 = scmp.lt.s32.totalorder %s12, 3
      // Predicated region
      $region17: #{tpu_custom_call.1} parent=5 // pred_check
        %p130 = pneg %p129
      $region18: #{tpu_custom_call.1} parent=5 // pred_check_branch
        %132 = sbr.rel (%p130) target = $region20
      $region19: #{tpu_custom_call.1} parent=5 // pred_region
        // Predicated region
        $region21: #{tpu_custom_call.1} parent=19 // pred_check
          %p133 = pneg %p32
        $region22: #{tpu_custom_call.1} parent=19 // pred_check_branch
          %135 = sbr.rel (%p133) target = $region24
        $region23: #{tpu_custom_call.1} parent=19 // pred_region
          %p136 = scmp.lt.s32.totalorder %s12, 2
          %s137 = scalar_select %p136, %s12, 2
          %s138 = smul.addr %s137, 8
          %s139 = scalar_lea.vmem %s0, %s138
        $region24: #{tpu_custom_call.1} parent=19 // pred_fallthru
          _
        // Predicated region
        $region25: #{tpu_custom_call.1} parent=19 // pred_check
          %p140 = pneg %p79
        $region26: #{tpu_custom_call.1} parent=19 // pred_check_branch
          %142 = sbr.rel (%p140) target = $region28
        $region27: #{tpu_custom_call.1} parent=19 // pred_region
          %p143 = scmp.lt.s32.totalorder %s12, 2
          %s144 = scalar_select %p143, %s12, 2
          %s145 = smul.addr %s144, 8
          %s146 = scalar_lea.vmem %s2, %s145
        $region28: #{tpu_custom_call.1} parent=19 // pred_fallthru
          _
      $region20: #{tpu_custom_call.1} parent=5 // pred_fallthru
        _
      %p147 = scmp.le.s32.totalorder 1, %s12
      %p148 = scmp.lt.s32.totalorder %s12, 4
      %p149 = pnand %p147, %p148
      %p150 = pneg %p149
      // Predicated region
      $region29: #{tpu_custom_call.1} parent=5 // pred_check
        _
      $region30: #{tpu_custom_call.1} parent=5 // pred_check_branch
        %152 = sbr.rel (%p149) target = $region32
      $region31: #{tpu_custom_call.1} parent=5 // pred_region
        %s153 = ssub.s32 %s12, 1
        %p154 = scmp.lt.s32.totalorder %s17, 2
        %s155 = scalar_select %p154, %s17, 2
        %s156 = smul.addr %s155, 8
        %s157 = scalar_lea.vmem %s0, %s156
        %p158 = pneg %p38
        %p159 = pneg %p35
        %p160 = pneg %p59
        %p161 = pneg %p56
        %p162 = scmp.lt.s32.totalorder %s17, 2
        %s163 = scalar_select %p162, %s17, 2
        %s164 = smul.addr %s163, 8
        %s165 = scalar_lea.vmem %s2, %s164
        %p166 = pneg %p85
        %p167 = pneg %p82
        %p168 = pneg %p111
        %p169 = pneg %p108
        %s170 = sand.u32 %s98, 1
        %s171 = scalar_lea.sflag [#allocation3], %s170
        %s172 = sand.u32 %s98, 1
        %s173 = smul.addr %s172, 8
        %s174 = scalar_lea.vmem [#allocation2], %s173
        %p175 = scmp.lt.s32.totalorder %s17, 2
        %s176 = scalar_select %p175, %s17, 2
        %s177 = smul.addr %s176, 8
        %s178 = scalar_lea.vmem %s0, %s177
        %p179 = scmp.lt.s32.totalorder %s17, 2
        %s180 = scalar_select %p179, %s17, 2
        %s181 = smul.addr %s180, 8
        %s182 = scalar_lea.vmem %s2, %s181
        %v183 = vld [vmem:[%s178] sm:$0xff]
        %v184 = vld [vmem:[%s1] sm:$0xff]
        %v185 = vld [vmem:[%s1 + $0x8] sm:$0xff]
        %v186 = vld [vmem:[%s1 + $0x10] sm:$0xff]
        %v187 = vld [vmem:[%s1 + $0x18] sm:$0xff]
        %vm188 = vcmask 261120
        %v190 = vsel %vm188, %v183, 0
        %192 = vmatpush.msra.mxu0 0.0
        %193 = vmatpush.msra.mxu0 0.0
        %194 = vmatpush.msra.mxu0 0.0
        %195 = vmatpush.msra.mxu0 0.0
        %196 = vmatpush.msra.mxu0 0.0
        %197 = vmatpush.msra.mxu0 0.0
        %198 = vmatpush.msra.mxu0 0.0
        %199 = vmatpush.msra.mxu0 0.0
        %200 = vmatpush.msra.mxu0 0.0
        %201 = vmatpush.msra.mxu0 0.0
        %202 = vmatpush.msra.mxu0 0.0
        %203 = vmatpush.msra.mxu0 0.0
        %204 = vmatpush.msra.mxu0 %v187
        %205 = vmatpush.msra.mxu0 %v186
        %206 = vmatpush.msra.mxu0 %v185
        %207 = vmatpush.msra.mxu0 %v184
        %208 = vmatmul.f32.gmra.mxu0 %v190
        %v209 = vpop.f32.mrf.mxu0
        %v210 = vadd.f32 0.0, %v209
        %211 = vdwg.mxu0
        %v212 = vld [vmem:[%s182] sm:$0xff]
        %v213 = vlaneseq
        %v214 = vand.u32 %v213, 127
        %215 = vset.pattern.permute.xlu0 0
        %216 = vperm.xlu0 %215, %v212
        %v217 = vpop.permute.xlu0 %216
        %vm218 = vcmp.eq.s32.totalorder %v214, %v217
        %v219 = vsel %vm218, %v210, 0.0
        %vm220 = vcmask 31744
        %v221 = vsel %vm220, %v219, 0.0
        %222 = vadd.xlane.f32.xlu0 %v221
        %v223 = vpop.xlane.xlu0 %222
        %v224 = vsub.f32 %v210, %v223
        %v225 = vmul.f32 %v224, 20.0
        %vm226 = vcmp.gt.f32.partialorder %v225, 20.0
        %v227 = vmin.f32 %v225, 20.0
        %v228 = vmul.f32 %v227, 1.442695
        %v229 = vpow.pop %v228
        %v230 = vadd.f32 %v229, 1.0
        %v231 = vlog2.pop %v230
        %v232 = vmul.f32 %v231, 0.6931472
        %v233 = vmul.f32 -0.5, %v229
        %v234 = vadd.f32 %v233, 1.0
        %v235 = vmul.f32 %v234, %v229
        %v236 = vand.u32 2147483647, %v229
        %vm237 = vcmp.lt.f32.partialorder %v236, 0.0004427343
        %v238 = vsel %vm237, %v235, %v232
        %v239 = vmul.f32 %v238, 0.05
        %v240 = vsel %vm226, %v224, %v239
        %v241 = vsel %vm218, 0.0, %v240
        %v242 = vsel %vm220, %v241, 0.0
        %243 = vadd.xlane.f32.xlu0 %v242
        %v244 = vpop.xlane.xlu0 %243
        %vm245 = vcmp.ge.s32.totalorder %v212, 0
        %v246 = vsel %vm245, %v244, 0.0
        %vm247 = vcmp.gt.f32.partialorder %v246, 0.0
        %vm248 = vmand %vm245, %vm247
        %v249 = vsel %vm248, 1.0, 0.0
        %vm250 = vcmask 7168
        %v251 = vsel %vm250, %v246, 0.0
        %252 = vadd.xlane.f32.xlu0 %v251
        %v253 = vpop.xlane.xlu0 %252
        %v254 = vrot.slane %v253, 4
        %v255 = vadd.f32 %v253, %v254
        %v256 = vrot.slane %v255, 2
        %v257 = vadd.f32 %v255, %v256
        %v258 = vrot.slane %v257, 1
        %v259 = vadd.f32 %v257, %v258
        %s260 = vtos %v259
        %v261 = vsel %vm250, %v249, 0.0
        %262 = vadd.xlane.f32.xlu0 %v261
        %v263 = vpop.xlane.xlu0 %262
        %v264 = vrot.slane %v263, 4
        %v265 = vadd.f32 %v263, %v264
        %v266 = vrot.slane %v265, 2
        %v267 = vadd.f32 %v265, %v266
        %v268 = vrot.slane %v267, 1
        %v269 = vadd.f32 %v267, %v268
        %s270 = vtos %v269
        %v271 = vlaneseq
        %v272 = vshrl.u32 %v271, 7
        %vm273 = vcmp.eq.s32.totalorder %v272, 0
        %vm274 = vcmp.eq.s32.totalorder %v214, 0
        %vm275 = vmand %vm273, %vm274
        %vm276 = vcmp.eq.s32.totalorder %v214, 1
        %vm277 = vmand %vm273, %vm276
        %v278 = vstv %s270
        %v279 = vsel %vm277, %v278, 0.0
        %v280 = vstv %s260
        %v281 = vsel %vm275, %v280, %v279
        %282 = vst [vmem:[%s174] sm:$0xff] %v281
        %s283 = sand.u32 %s98, 1
        %s284 = scalar_lea.sflag [#allocation3], %s283
        %s285 = sand.u32 %s98, 1
        %s286 = smul.addr %s285, 8
        %s287 = scalar_lea.vmem [#allocation2], %s286
        // Predicated region
        $region33: #{tpu_custom_call.1} parent=31 // pred_check
          %p288 = pneg %p108
        $region34: #{tpu_custom_call.1} parent=31 // pred_check_branch
          %290 = sbr.rel (%p288) target = $region36
        $region35: #{tpu_custom_call.1} parent=31 // pred_region
          %292 = vsyncadd %s284, 0
          %s293 = smul.addr %s17, 8
          %s294 = scalar_lea.hbm %s3, %s293
          %s296 = sshll.u32 %s287, 4
          %s297 = int_to_ptr.vmem [resolvable:$true] %s296
          %s298 = sshll.u32 %s294, 4
          %s299 = int_to_ptr.hbm [resolvable:$true] %s298
          %301 = dma.vmem_to_hbm [thread:$0]  %s297, 128, %s299, %s284
        $region36: #{tpu_custom_call.1} parent=31 // pred_fallthru
          _
      $region32: #{tpu_custom_call.1} parent=5 // pred_fallthru
        _
      %p302 = scmp.le.s32.totalorder 2, %s12
      // Predicated region
      $region37: #{tpu_custom_call.1} parent=5 // pred_check
        %p303 = pneg %p302
      $region38: #{tpu_custom_call.1} parent=5 // pred_check_branch
        %305 = sbr.rel (%p303) target = $region40
      $region39: #{tpu_custom_call.1} parent=5 // pred_region
        %s306 = ssub.s32 %s12, 2
        // Predicated region
        $region41: #{tpu_custom_call.1} parent=39 // pred_check
          %p307 = pneg %p114
        $region42: #{tpu_custom_call.1} parent=39 // pred_check_branch
          %309 = sbr.rel (%p307) target = $region44
        $region43: #{tpu_custom_call.1} parent=39 // pred_region
          %s310 = sand.u32 %s99, 1
          %s311 = scalar_lea.sflag [#allocation3], %s310
          %s312 = sand.u32 %s99, 1
          %s313 = smul.addr %s312, 8
          %s314 = scalar_lea.vmem [#allocation2], %s313
          %316 = dma.done %s311, 128
        $region44: #{tpu_custom_call.1} parent=39 // pred_fallthru
          _
      $region40: #{tpu_custom_call.1} parent=5 // pred_fallthru
        _
    $region6: #{tpu_custom_call.1} parent=1 // loop_footer
      %s16 = sadd.s32 1, %s12
    $region7: #{tpu_custom_call.1} parent=1 // loop_footer_branch
      %11 = sbr.rel target = $region3
    $region8: #{tpu_custom_call.1} parent=1 // loop_exit
      _
    %317 = vsyncpa [#allocation3], 1
    %s318 = scalar_lea.sflag [#allocation3], 1
    %319 = vsyncpa %s318, 1

</llo_original>
